<compile_context>
chip_gen: v7x
topology: tpu7x:2x2x1
jax: 0.10.0
libtpu: 0.0.40
codegen_flags: <defaults>
</compile_context>

<pallas_src>
import functools

import jax
import jax.numpy as jnp
from jax.experimental import pallas as pl
from jax.experimental.pallas import tpu as pltpu


_NEG = -1.0e30  # K-dim pad value: exp(_NEG - max) == 0, row max unaffected.


def _round_up(x, m):
    return (x + m - 1) // m * m


def _cdiv(a, b):
    return (a + b - 1) // b


def _pool_matrix(in_size, kernel, stride, padding):
    """0/1 matrix P (out, in): P[i, j] = 1 iff column j is inside window i.
    Positions in the zero-padding region are simply dropped."""
    out_size = (in_size + 2 * padding - kernel) // stride + 1
    rows = []
    for i in range(out_size):
        start = i * stride - padding
        rows.append([1.0 if (start <= j < start + kernel) else 0.0
                     for j in range(in_size)])
    return jnp.asarray(rows, dtype=jnp.float32)


@functools.lru_cache(maxsize=None)
def _vmem_config():
    """(vmem_limit_bytes, input_block_budget_bytes, small_vmem) per generation."""
    vmem_bytes = None
    try:
        vmem_bytes = int(pltpu.get_tpu_info().vmem_capacity_bytes)
    except Exception:
        try:
            kind = jax.devices()[0].device_kind.lower()
            if "v5" in kind or "v6" in kind:
                vmem_bytes = 128 * 1024 * 1024
        except Exception:
            pass
    if vmem_bytes is not None and vmem_bytes >= 100 * 1024 * 1024:
        # v5e / v6e: 128 MiB physical VMEM -> bigger blocks, 64 MiB scoped.
        return (64 * 1024 * 1024, 4 * 1024 * 1024, False)
    if vmem_bytes is not None:
        # v7x-class: 64 MiB physical per TensorCore -> keep scoped <= 40 MiB.
        return (40 * 1024 * 1024, 2 * 1024 * 1024, True)
    # Unknown part: conservative defaults that run everywhere.
    return (32 * 1024 * 1024, 2 * 1024 * 1024, True)


def _choose_grid(b, hw_pad, in_budget, small_vmem):
    """Pick (rows per step, num steps, padded rows) with balanced steps."""
    b8 = _round_up(max(b, 1), 8)
    row_bytes = hw_pad * 4
    tb_cap = 1024 if small_vmem else 2048
    tb_max = max(8, min(tb_cap, (in_budget // row_bytes) // 8 * 8))
    min_steps = 2 if b8 > 8 else 1
    if small_vmem and b8 >= 32:
        min_steps = 4                      # >= 2 steps per v7x TensorCore
    num_steps = max(_cdiv(b8, tb_max), min_steps)
    if small_vmem and b8 >= 32:
        num_steps = _round_up(num_steps, 2)
    tb = max(8, _round_up(_cdiv(b8, num_steps), 8))
    return tb, num_steps, tb * num_steps


def _softpool_kernel(x_ref, p2t_ref, o_ref):
    # x_ref: (TB, HWp); p2t_ref: (HWp, HoWop); o_ref: (TB, HoWop)
    tb = x_ref.shape[0]
    x = x_ref[...].astype(jnp.float32)
    # Per-plane max shift: exact for the num/den ratio, avoids exp overflow.
    m = jnp.max(x, axis=-1, keepdims=True)
    e = jnp.exp(x - m)
    # Fused GEMM: stack [e*x ; e] along M so the pooling matrix is pushed
    # into MXU weight registers once per grid step instead of twice.
    stacked = jnp.concatenate([e * x, e], axis=0)                # (2*TB, HWp)
    res = jnp.dot(stacked, p2t_ref[...], preferred_element_type=jnp.float32)
    num = res[:tb, :]
    den = jnp.maximum(res[tb:, :], jnp.finfo(jnp.float32).tiny)  # no 0/0 NaN
    o_ref[...] = (num * pl.reciprocal(den, approx=False)).astype(o_ref.dtype)


def soft_pooling_2d(x, *, kernel_size, stride=None, padding=0):
    """SoftPooling2D forward. x: (N, C, H, W) -> (N, C, Ho, Wo)."""
    if stride is None:
        stride = kernel_size
    return _softpool_impl(x, int(kernel_size), int(stride), int(padding),
                          _vmem_config())


@functools.partial(jax.jit, static_argnums=(1, 2, 3, 4))
def _softpool_impl(x, kernel_size, stride, padding, cfg):
    vmem_limit, in_budget, small_vmem = cfg
    n, c, h, w = x.shape
    ph = _pool_matrix(h, kernel_size, stride, padding)           # (Ho, H)
    pw = _pool_matrix(w, kernel_size, stride, padding)           # (Wo, W)
    ho, wo = ph.shape[0], pw.shape[0]

    b = n * c
    hw = h * w
    howo = ho * wo
    hw_pad = _round_up(hw, 128)       # lane-aligned K dim (unmasked loads)
    howo_pad = _round_up(howo, 128)   # lane-dense output (unmasked stores)

    # Dense pooling matrix for flattened planes (transposed), zero-padded:
    #   p2t[ih*W + iw, io*Wo + jo] = Ph[io, ih] * Pw[jo, iw]
    p2t = jnp.kron(ph, pw).T                                     # (H*W, Ho*Wo)
    p2t = jnp.pad(p2t, ((0, hw_pad - hw), (0, howo_pad - howo)))

    tb, num_steps, b_pad = _choose_grid(b, hw_pad, in_budget, small_vmem)

    x_flat = x.reshape(b, hw)
    # Pad the K dim with a large negative value (exp -> 0, max unaffected);
    # padded rows stay finite and are sliced off after the call.
    x_flat = jnp.pad(x_flat, ((0, b_pad - b), (0, hw_pad - hw)),
                     constant_values=_NEG)

    cost = pl.CostEstimate(
        flops=2 * (2 * b_pad) * hw_pad * howo_pad + 6 * b_pad * hw_pad,
        transcendentals=b_pad * hw_pad,
        bytes_accessed=(b_pad * hw_pad + b_pad * howo_pad
                        + hw_pad * howo_pad) * 4,
    )

    # Grid-invariant pooling matrix: single-buffer it when supported.
    try:
        p2t_spec = pl.BlockSpec((hw_pad, howo_pad), lambda i: (0, 0),
                                pipeline_mode=pl.Buffered(1))
    except Exception:
        p2t_spec = pl.BlockSpec((hw_pad, howo_pad), lambda i: (0, 0))

    out_flat = pl.pallas_call(
        _softpool_kernel,
        out_shape=jax.ShapeDtypeStruct((b_pad, howo_pad), x.dtype),
        grid_spec=pltpu.PrefetchScalarGridSpec(
            num_scalar_prefetch=0,
            grid=(num_steps,),
            in_specs=[
                pl.BlockSpec((tb, hw_pad), lambda i: (i, 0)),
                p2t_spec,
            ],
            out_specs=pl.BlockSpec((tb, howo_pad), lambda i: (i, 0)),
        ),
        compiler_params=pltpu.CompilerParams(
            dimension_semantics=("parallel",),
            vmem_limit_bytes=vmem_limit,
        ),
        cost_estimate=cost,
    )(x_flat, p2t)

    return out_flat[:b, :howo].reshape(n, c, ho, wo)


def _reference(x, kernel_size, stride, padding):
    # Pure-JAX reference: sum_window(exp(x)*x) / sum_window(exp(x)).
    e = jnp.exp(x)

    def pool_sum(a):
        return jax.lax.reduce_window(
            a, 0.0, jax.lax.add,
            window_dimensions=(1, 1, kernel_size, kernel_size),
            window_strides=(1, 1, stride, stride),
            padding=[(0, 0), (0, 0), (padding, padding), (padding, padding)],
        )

    return pool_sum(e * x) / pool_sum(e)


if __name__ == "__main__":
    key = jax.random.PRNGKey(0)
    k1, k2 = jax.random.split(key)
    x = jax.random.normal(k1, (2, 4, 16, 16), dtype=jnp.float32)

    # Non-overlapping config (MSLA default-style): kernel=2, stride=2, pad=0.
    out = jax.block_until_ready(
        soft_pooling_2d(x, kernel_size=2, stride=2, padding=0))
    ref = _reference(x, 2, 2, 0)
    assert out.shape == (2, 4, 8, 8), out.shape
    assert jnp.allclose(out, ref, atol=1e-5, rtol=1e-5), "mismatch (k2,s2,p0)"

    # Overlapping + padded config: kernel=3, stride=2, pad=1.
    out2 = jax.block_until_ready(
        soft_pooling_2d(x, kernel_size=3, stride=2, padding=1))
    ref2 = _reference(x, 3, 2, 1)
    assert out2.shape == ref2.shape, (out2.shape, ref2.shape)
    assert jnp.allclose(out2, ref2, atol=1e-5, rtol=1e-5), "mismatch (k3,s2,p1)"

    # Non-128-aligned spatial size (exercises K-dim / output-lane padding).
    x3 = jax.random.normal(k2, (2, 4, 16, 11), dtype=jnp.float32)
    out3 = jax.block_until_ready(
        soft_pooling_2d(x3, kernel_size=2, stride=2, padding=0))
    ref3 = _reference(x3, 2, 2, 0)
    assert out3.shape == ref3.shape, (out3.shape, ref3.shape)
    assert jnp.allclose(out3, ref3, atol=1e-5, rtol=1e-5), "mismatch (16x11)"

    print("KERNEL_OK")
</pallas_src>

<mosaic_0001>
module attributes {stable_mosaic.version = 11 : i64} {
  func.func @_softpool_kernel(%arg0: i32, %arg1: memref<8x256xf32, #tpu.memory_space<vmem>>, %arg2: memref<256x128xf32, #tpu.memory_space<vmem>>, %arg3: memref<8x128xf32, #tpu.memory_space<vmem>>) attributes {dimension_semantics = [#tpu.dimension_semantics<parallel>], iteration_bounds = array<i64: 1>, scalar_prefetch = 0 : i64, scratch_operands = 0 : i64, tpu.core_type = #tpu.core_type<tc>, window_params = [{transform_indices = @transform_0, window_bounds = array<i64: 8, 256>}, {pipeline_mode = #tpu.pipeline_mode<synchronous>, transform_indices = @transform_1, window_bounds = array<i64: 256, 128>}, {transform_indices = @transform_2, window_bounds = array<i64: 8, 128>}]} {
    %c0 = arith.constant 0 : index
    %c0_0 = arith.constant 0 : index
    %0 = vector.load %arg1[%c0, %c0_0] : memref<8x256xf32, #tpu.memory_space<vmem>>, vector<8x256xf32>
    %cst = arith.constant dense<0xFF800000> : vector<8xf32>
    %1 = vector.multi_reduction <maximumf>, %0, %cst [1] : vector<8x256xf32> to vector<8xf32>
    %2 = vector.shape_cast %1 : vector<8xf32> to vector<8x1xf32>
    %3 = vector.broadcast %2 : vector<8x1xf32> to vector<8x256xf32>
    %4 = arith.subf %0, %3 : vector<8x256xf32>
    %5 = math.exp %4 : vector<8x256xf32>
    %6 = arith.mulf %5, %0 : vector<8x256xf32>
    %7 = tpu.concatenate %6, %5 in 0 : vector<8x256xf32>, vector<8x256xf32> -> vector<16x256xf32>
    %c0_1 = arith.constant 0 : index
    %c0_2 = arith.constant 0 : index
    %8 = vector.load %arg2[%c0_1, %c0_2] : memref<256x128xf32, #tpu.memory_space<vmem>>, vector<256x128xf32>
    %cst_3 = arith.constant dense<0.000000e+00> : vector<16x128xf32>
    %9 = tpu.matmul %7, %8, %cst_3 {dimension_numbers = #tpu.dot_dimension_numbers<[1], [0], [0], [1], [0, 0, 1, 1], [], []>} : vector<16x256xf32>, vector<256x128xf32>, vector<16x128xf32> -> vector<16x128xf32>
    %10 = vector.extract_strided_slice %9 {offsets = [0, 0], sizes = [8, 128], strides = [1, 1]} : vector<16x128xf32> to vector<8x128xf32>
    %11 = vector.extract_strided_slice %9 {offsets = [8, 0], sizes = [8, 128], strides = [1, 1]} : vector<16x128xf32> to vector<8x128xf32>
    %cst_4 = arith.constant 1.17549435E-38 : f32
    %12 = vector.broadcast %cst_4 : f32 to vector<8x128xf32>
    %13 = arith.maximumf %11, %12 : vector<8x128xf32>
    %14 = tpu.reciprocal %13 : vector<8x128xf32> -> vector<8x128xf32>
    %15 = arith.mulf %10, %14 : vector<8x128xf32>
    %c0_5 = arith.constant 0 : index
    %c0_6 = arith.constant 0 : index
    %16 = vector.load %arg3[%c0_5, %c0_6] : memref<8x128xf32, #tpu.memory_space<vmem>>, vector<8x128xf32>
    tpu.vector_store %arg3[%c0_5, %c0_6], %15 {strides = array<i32>} : memref<8x128xf32, #tpu.memory_space<vmem>>, vector<8x128xf32>,
    return
  }
  func.func @transform_0(%arg0: i32) -> (i32, i32) {
    %c0_i32 = arith.constant 0 : i32
    %c0_i32_0 = arith.constant 0 : i32
    return %arg0, %c0_i32 : i32, i32
  }
  func.func @transform_1(%arg0: i32) -> (i32, i32) {
    %c0_i32 = arith.constant 0 : i32
    %c0_i32_0 = arith.constant 0 : i32
    %c0_i32_1 = arith.constant 0 : i32
    return %c0_i32, %c0_i32_0 : i32, i32
  }
  func.func @transform_2(%arg0: i32) -> (i32, i32) {
    %c0_i32 = arith.constant 0 : i32
    %c0_i32_0 = arith.constant 0 : i32
    return %arg0, %c0_i32 : i32, i32
  }
}

</mosaic_0001>

<llo_original>
// kernel: _softpool_impl.1
$region0: #{_softpool_impl.1}
  #allocation0 [shape = 'u32[]', space=smem, size = 0x4, offset = 0x4, fixed_abs, tag = 'smem constant byte address 0x4 - core index']
  #allocation1 [shape = 'u32[144,128]{1,0:T(1,128)}', space=vmem, size = 0x12000, scoped, tag = 'internal scratch']
  %s0 = inlined_call_operand.vmem [shape: f32[8,256], index: 0, kind: input, shape index: {}]
  %s1 = inlined_call_operand.vmem [shape: f32[256,128], index: 1, kind: input, shape index: {}]
  %s2 = inlined_call_operand.vmem [shape: f32[8,128], index: 2, kind: output, shape index: {}]
  %s3 = sld [smem:[#allocation0]]
  $region18: #{_softpool_impl.1} parent=0
    _
  %s5 = ssub.s32 1, %s3
  %s6 = scalar_select 0, %s5, %s3
  // Predicated region
  $region2: #{_softpool_impl.1} parent=0 // pred_check
    _
  $region3: #{_softpool_impl.1} parent=0 // pred_check_branch
    %8 = sbr.rel (0) target = $region5
  $region4: #{_softpool_impl.1} parent=0 // pred_region
    _
  $region5: #{_softpool_impl.1} parent=0 // pred_fallthru
    _
  // Predicated region
  $region6: #{_softpool_impl.1} parent=0 // pred_check
    _
  $region7: #{_softpool_impl.1} parent=0 // pred_check_branch
    %10 = sbr.rel (0) target = $region9
  $region8: #{_softpool_impl.1} parent=0 // pred_region
    _
  $region9: #{_softpool_impl.1} parent=0 // pred_fallthru
    _
  %v11 = vld [vmem:[%s0] sm:$0xff]
  %v12 = vld [vmem:[%s0 + $0x8] sm:$0xff]
  %v13 = vmax.f32 %v11, %v12
  %14 = vmax.xlane.f32.xlu0 %v13
  %v15 = vpop.xlane.xlu0 %14
  %v16 = vsub.f32 %v11, %v15
  %v17 = vsub.f32 %v12, %v15
  %v18 = vmul.f32 %v16, 1.442695
  %v19 = vpow.pop %v18
  %v20 = vmul.f32 %v17, 1.442695
  %v21 = vpow.pop %v20
  %v22 = vmul.f32 %v19, %v11
  %v23 = vmul.f32 %v21, %v12
  %v24 = vld [vmem:[%s1] sm:$0xff]
  %v25 = vld [vmem:[%s1 + $0x8] sm:$0xff]
  %v26 = vld [vmem:[%s1 + $0x10] sm:$0xff]
  %v27 = vld [vmem:[%s1 + $0x18] sm:$0xff]
  %v28 = vld [vmem:[%s1 + $0x20] sm:$0xff]
  %v29 = vld [vmem:[%s1 + $0x28] sm:$0xff]
  %v30 = vld [vmem:[%s1 + $0x30] sm:$0xff]
  %v31 = vld [vmem:[%s1 + $0x38] sm:$0xff]
  %v32 = vld [vmem:[%s1 + $0x40] sm:$0xff]
  %v33 = vld [vmem:[%s1 + $0x48] sm:$0xff]
  %v34 = vld [vmem:[%s1 + $0x50] sm:$0xff]
  %v35 = vld [vmem:[%s1 + $0x58] sm:$0xff]
  %v36 = vld [vmem:[%s1 + $0x60] sm:$0xff]
  %v37 = vld [vmem:[%s1 + $0x68] sm:$0xff]
  %v38 = vld [vmem:[%s1 + $0x70] sm:$0xff]
  %v39 = vld [vmem:[%s1 + $0x78] sm:$0xff]
  %v40 = vld [vmem:[%s1 + $0x80] sm:$0xff]
  %v41 = vld [vmem:[%s1 + $0x88] sm:$0xff]
  %v42 = vld [vmem:[%s1 + $0x90] sm:$0xff]
  %v43 = vld [vmem:[%s1 + $0x98] sm:$0xff]
  %v44 = vld [vmem:[%s1 + $0xa0] sm:$0xff]
  %v45 = vld [vmem:[%s1 + $0xa8] sm:$0xff]
  %v46 = vld [vmem:[%s1 + $0xb0] sm:$0xff]
  %v47 = vld [vmem:[%s1 + $0xb8] sm:$0xff]
  %v48 = vld [vmem:[%s1 + $0xc0] sm:$0xff]
  %v49 = vld [vmem:[%s1 + $0xc8] sm:$0xff]
  %v50 = vld [vmem:[%s1 + $0xd0] sm:$0xff]
  %v51 = vld [vmem:[%s1 + $0xd8] sm:$0xff]
  %v52 = vld [vmem:[%s1 + $0xe0] sm:$0xff]
  %v53 = vld [vmem:[%s1 + $0xe8] sm:$0xff]
  %v54 = vld [vmem:[%s1 + $0xf0] sm:$0xff]
  %v55 = vld [vmem:[%s1 + $0xf8] sm:$0xff]
  %56 = vmatprep.subr.mxu0 0.0
  %57 = vmatpush1.msra.mxu0 %v24
  %58 = vmatprep.subr.mxu0 0.0
  %59 = vmatpush1.msra.mxu0 %v25
  %60 = vmatprep.subr.mxu0 0.0
  %61 = vmatpush1.msra.mxu0 %v26
  %62 = vmatprep.subr.mxu0 0.0
  %63 = vmatpush1.msra.mxu0 %v27
  %64 = vmatprep.subr.mxu0 0.0
  %65 = vmatpush1.msra.mxu0 %v28
  %66 = vmatprep.subr.mxu0 0.0
  %67 = vmatpush1.msra.mxu0 %v29
  %68 = vmatprep.subr.mxu0 0.0
  %69 = vmatpush1.msra.mxu0 %v30
  %70 = vmatprep.subr.mxu0 0.0
  %71 = vmatpush1.msra.mxu0 %v31
  %72 = vmatprep.subr.mxu0 0.0
  %73 = vmatpush1.msra.mxu0 %v32
  %74 = vmatprep.subr.mxu0 0.0
  %75 = vmatpush1.msra.mxu0 %v33
  %76 = vmatprep.subr.mxu0 0.0
  %77 = vmatpush1.msra.mxu0 %v34
  %78 = vmatprep.subr.mxu0 0.0
  %79 = vmatpush1.msra.mxu0 %v35
  %80 = vmatprep.subr.mxu0 0.0
  %81 = vmatpush1.msra.mxu0 %v36
  %82 = vmatprep.subr.mxu0 0.0
  %83 = vmatpush1.msra.mxu0 %v37
  %84 = vmatprep.subr.mxu0 0.0
  %85 = vmatpush1.msra.mxu0 %v38
  %86 = vmatprep.subr.mxu0 0.0
  %87 = vmatpush1.msra.mxu0 %v39
  %88 = vmatprep.subr.mxu0 0.0
  %89 = vmatpush1.msra.mxu0 %v40
  %90 = vmatprep.subr.mxu0 0.0
  %91 = vmatpush1.msra.mxu0 %v41
  %92 = vmatprep.subr.mxu0 0.0
  %93 = vmatpush1.msra.mxu0 %v42
  %94 = vmatprep.subr.mxu0 0.0
  %95 = vmatpush1.msra.mxu0 %v43
  %96 = vmatprep.subr.mxu0 0.0
  %97 = vmatpush1.msra.mxu0 %v44
  %98 = vmatprep.subr.mxu0 0.0
  %99 = vmatpush1.msra.mxu0 %v45
  %100 = vmatprep.subr.mxu0 0.0
  %101 = vmatpush1.msra.mxu0 %v46
  %102 = vmatprep.subr.mxu0 0.0
  %103 = vmatpush1.msra.mxu0 %v47
  %104 = vmatprep.subr.mxu0 0.0
  %105 = vmatpush1.msra.mxu0 %v48
  %106 = vmatprep.subr.mxu0 0.0
  %107 = vmatpush1.msra.mxu0 %v49
  %108 = vmatprep.subr.mxu0 0.0
  %109 = vmatpush1.msra.mxu0 %v50
  %110 = vmatprep.subr.mxu0 0.0
  %111 = vmatpush1.msra.mxu0 %v51
  %112 = vmatprep.subr.mxu0 0.0
  %113 = vmatpush1.msra.mxu0 %v52
  %114 = vmatprep.subr.mxu0 0.0
  %115 = vmatpush1.msra.mxu0 %v53
  %116 = vmatprep.subr.mxu0 0.0
  %117 = vmatpush1.msra.mxu0 %v54
  %118 = vmatprep.subr.mxu0 0.0
  %119 = vmatpush1.msra.mxu0 %v55
  %120 = vmatprep.mubr.f32.mxu0 %v23
  %121 = vmatmul.mubr.f32.gmra.mrb[0].mxu0 %v22
  %v122 = vpop.f32.mrb[0].mxu0
  %v123 = vadd.f32 0.0, %v122
  %v124 = vpop.f32.mrb[0].mxu0
  %125 = vmatprep.mubr.f32.mxu0 %v21
  %126 = vmatmul.mubr.f32.gmra.mrb[0].mxu0 %v19
  %v127 = vpop.f32.mrb[0].mxu0
  %v128 = vadd.f32 0.0, %v127
  %v129 = vpop.f32.mrb[0].mxu0
  %130 = vdwg.mxu0
  %v131 = vmax.f32 %v128, 1.1754944e-38
  %v132 = vrcp.pop %v131
  %v133 = vmul.f32 %v123, %v132
  %134 = vst [vmem:[%s2] sm:$0xff] %v133
  // Predicated region
  $region10: #{_softpool_impl.1} parent=0 // pred_check
    _
  $region11: #{_softpool_impl.1} parent=0 // pred_check_branch
    %136 = sbr.rel (0) target = $region13
  $region12: #{_softpool_impl.1} parent=0 // pred_region
    _
  $region13: #{_softpool_impl.1} parent=0 // pred_fallthru
    _
  // Predicated region
  $region14: #{_softpool_impl.1} parent=0 // pred_check
    _
  $region15: #{_softpool_impl.1} parent=0 // pred_check_branch
    %138 = sbr.rel (0) target = $region17
  $region16: #{_softpool_impl.1} parent=0 // pred_region
    _
  $region17: #{_softpool_impl.1} parent=0 // pred_fallthru
    _

</llo_original>
